<compile_context>
chip_gen: v7x
topology: tpu7x:2x2x1
jax: 0.10.0
libtpu: 0.0.40
codegen_flags: <defaults>
</compile_context>

<pallas_src>
import functools

import jax
import jax.numpy as jnp
from jax.experimental import pallas as pl
from jax.experimental.pallas import tpu as pltpu


def _round_up(x, m):
    return ((x + m - 1) // m) * m


def _vmem_capacity_bytes():
    """Physical VMEM per TensorCore; conservative 64 MiB fallback (v7x)."""
    try:
        info = pltpu.get_tpu_info()
        cap = getattr(info, "vmem_capacity_bytes", None)
        if cap:
            return int(cap)
    except Exception:
        pass
    return 64 * 1024 * 1024


def _derive_tiles(n, dim, itemsize, budget_bytes, align):
    """Pick (tm, td) so 6 double-buffered (tm, td) streams fit the budget."""
    n_aligned = _round_up(max(n, 1), align)
    bytes_per_row = 6 * 2 * dim * itemsize          # 6 streams, double-buffered
    max_tm = budget_bytes // max(bytes_per_row, 1)
    if max_tm >= align:
        td = dim                                    # full-width row tiles fit
        tm = (max_tm // align) * align
        tm = max(align, min(tm, n_aligned, 4096))
    else:
        tm = align                                  # huge dim: split lanes too
        max_td = budget_bytes // (6 * 2 * align * itemsize)
        td = max(128, (max_td // 128) * 128)
        td = min(td, dim)
    return tm, td


def _make_kernel(tm, td, n, dim, num_row_tiles, num_dim_tiles,
                 needs_row_mask, needs_col_mask):
    f32 = jnp.float32

    def kernel(sub_e_ref, sub_r_ref,
               loc_e_ref, loc_r_ref,
               rel_e_ref, rel_r_ref,
               w_ref, out_ref, acc_ref):
        t = pl.program_id(0)
        d = pl.program_id(1)

        # Zero the resident vector accumulator on the first grid step.
        @pl.when((t == 0) & (d == 0))
        def _():
            acc_ref[...] = jnp.zeros_like(acc_ref)

        d_sub = sub_r_ref[...].astype(f32) - sub_e_ref[...].astype(f32)
        d_loc = loc_r_ref[...].astype(f32) - loc_e_ref[...].astype(f32)
        d_rel = rel_r_ref[...].astype(f32) - rel_e_ref[...].astype(f32)

        # Weights arrive pre-scaled by 1/N; fused weighted squared error.
        w = w_ref[...].astype(f32)                  # (tm, 3)
        term = (w[:, 0:1] * (d_sub * d_sub)
                + w[:, 1:2] * (d_loc * d_loc)
                + w[:, 2:3] * (d_rel * d_rel))      # (tm, td)

        if needs_row_mask:
            # Mask rows beyond the true sent_num (padded tail row tile).
            row = t * tm + jax.lax.broadcasted_iota(jnp.int32, (tm, 1), 0)
            term = jnp.where(row < n, term, f32(0.0))
        if needs_col_mask:
            # Mask lanes beyond the true dim (padded tail dim tile).
            col = d * td + jax.lax.broadcasted_iota(jnp.int32, (1, td), 1)
            term = jnp.where(col < dim, term, f32(0.0))

        # Sublane-only reduction into the vector accumulator (no per-step
        # cross-lane reduce, no per-step scalar SMEM read-modify-write).
        acc_ref[...] += jnp.sum(term, axis=0, keepdims=True)

        # Single finalize: cross-lane reduce + scalar SMEM store.
        @pl.when((t == num_row_tiles - 1) & (d == num_dim_tiles - 1))
        def _():
            out_ref[0, 0] = jnp.sum(acc_ref[...])

    return kernel


def adap_visual_reconstruct_loss(sub_phrase_emb, sub_phrase_recons,
                                 loc_phrase_emb, loc_phrase_recons,
                                 rel_phrase_emb, rel_phrase_recons,
                                 weights, *, block_rows=None, block_cols=None):
    """Embeddings: (sent_num, dim). weights: (sent_num, 3). Returns scalar f32."""
    n, dim = sub_phrase_emb.shape
    itemsize = jnp.dtype(sub_phrase_emb.dtype).itemsize
    # Sublane alignment respects sub-32-bit packing (f32:8, bf16:16, int8/fp8:32).
    align = {4: 8, 2: 16, 1: 32}.get(itemsize, 8)

    # Generation-aware pipelined-VMEM budget.
    vmem_cap = _vmem_capacity_bytes()
    if vmem_cap >= 100 * 1024 * 1024:               # v5e / v6e: 128 MiB physical
        budget, vmem_limit = 48 * 1024 * 1024, 64 * 1024 * 1024
    else:                                           # v7x (64 MiB / TC) / unknown
        budget, vmem_limit = 24 * 1024 * 1024, 32 * 1024 * 1024

    tm, td = _derive_tiles(n, dim, itemsize, budget, align)
    if block_rows is not None:                      # test / tuning override
        tm = max(align, _round_up(int(block_rows), align))
        tm = min(tm, _round_up(n, align))
    if block_cols is not None:                      # test / tuning override
        td = int(block_cols)
        if td < dim:
            td = max(128, _round_up(td, 128))
        td = min(td, dim)

    num_row_tiles = pl.cdiv(n, tm)
    num_dim_tiles = pl.cdiv(dim, td)
    needs_row_mask = (num_row_tiles * tm) != n
    needs_col_mask = (num_dim_tiles * td) != dim

    # Fold the mean's 1/N into the weights (free wrapper-side multiply) and
    # keep them as a single (N, 3) pipelined stream.
    w_scaled = weights.astype(jnp.float32) * jnp.float32(1.0 / n)

    emb_spec = pl.BlockSpec((tm, td), lambda t, d: (t, d))
    w_spec = pl.BlockSpec((tm, 3), lambda t, d: (t, 0))

    kernel = _make_kernel(tm, td, n, dim, num_row_tiles, num_dim_tiles,
                          needs_row_mask, needs_col_mask)

    cost = pl.CostEstimate(
        flops=int(11 * n * dim),
        transcendentals=0,
        bytes_accessed=int(6 * n * dim * itemsize + 3 * n * 4 + 4),
    )

    out = pl.pallas_call(
        kernel,
        out_shape=jax.ShapeDtypeStruct((1, 1), jnp.float32),
        grid=(num_row_tiles, num_dim_tiles),
        in_specs=[emb_spec] * 6 + [w_spec],
        out_specs=pl.BlockSpec(memory_space=pltpu.MemorySpace.SMEM),
        scratch_shapes=[pltpu.VMEM((1, td), jnp.float32)],
        compiler_params=pltpu.CompilerParams(
            dimension_semantics=("arbitrary", "arbitrary"),  # both are reductions
            vmem_limit_bytes=vmem_limit,
        ),
        cost_estimate=cost,
    )(sub_phrase_emb, sub_phrase_recons,
      loc_phrase_emb, loc_phrase_recons,
      rel_phrase_emb, rel_phrase_recons,
      w_scaled)

    return out[0, 0]


def _reference(sub_e, sub_r, loc_e, loc_r, rel_e, rel_r, w):
    sub = ((sub_r - sub_e) ** 2).sum(1)
    loc = ((loc_r - loc_e) ** 2).sum(1)
    rel = ((rel_r - rel_e) ** 2).sum(1)
    stacked = jnp.stack([sub, loc, rel], axis=1)
    return (w * stacked).sum(1).mean(0)


def _run_case(sent_num, dim, key, block_rows=None, block_cols=None):
    keys = jax.random.split(key, 7)
    mk = lambda k: jax.random.normal(k, (sent_num, dim), jnp.float32)
    sub_e, sub_r, loc_e, loc_r, rel_e, rel_r = (mk(k) for k in keys[:6])
    w = jax.nn.softmax(
        jax.random.normal(keys[6], (sent_num, 3), jnp.float32), axis=1)

    loss = adap_visual_reconstruct_loss(sub_e, sub_r, loc_e, loc_r,
                                        rel_e, rel_r, w,
                                        block_rows=block_rows,
                                        block_cols=block_cols)
    loss = jax.block_until_ready(loss)

    ref = _reference(sub_e, sub_r, loc_e, loc_r, rel_e, rel_r, w)
    assert jnp.allclose(loss, ref, rtol=1e-4, atol=1e-5), (sent_num, loss, ref)


if __name__ == "__main__":
    key = jax.random.PRNGKey(0)
    # Small single-tile case matching the module docstring (sent_num, 512).
    _run_case(sent_num=8, dim=512, key=key)
    # Multi row-tile case exercising the pipelined grid + masked tail row tile.
    _run_case(sent_num=40, dim=512, key=key, block_rows=16)
    # Dim-split case exercising the second grid axis + masked tail dim tile.
    _run_case(sent_num=24, dim=384, key=key, block_rows=8, block_cols=256)
    print("KERNEL_OK")
</pallas_src>

<mosaic_0001>
module attributes {stable_mosaic.version = 11 : i64} {
  func.func @kernel(%arg0: i32, %arg1: i32, %arg2: memref<8x512xf32, #tpu.memory_space<vmem>>, %arg3: memref<8x512xf32, #tpu.memory_space<vmem>>, %arg4: memref<8x512xf32, #tpu.memory_space<vmem>>, %arg5: memref<8x512xf32, #tpu.memory_space<vmem>>, %arg6: memref<8x512xf32, #tpu.memory_space<vmem>>, %arg7: memref<8x512xf32, #tpu.memory_space<vmem>>, %arg8: memref<8x3xf32, #tpu.memory_space<vmem>>, %arg9: memref<1x1xf32, #tpu.memory_space<smem>>, %arg10: memref<1x512xf32, #tpu.memory_space<vmem>>) attributes {dimension_semantics = [#tpu.dimension_semantics<arbitrary>, #tpu.dimension_semantics<arbitrary>], iteration_bounds = array<i64: 1, 1>, scalar_prefetch = 0 : i64, scratch_operands = 1 : i64, tpu.core_type = #tpu.core_type<tc>, window_params = [{transform_indices = @transform_0, window_bounds = array<i64: 8, 512>}, {transform_indices = @transform_1, window_bounds = array<i64: 8, 512>}, {transform_indices = @transform_2, window_bounds = array<i64: 8, 512>}, {transform_indices = @transform_3, window_bounds = array<i64: 8, 512>}, {transform_indices = @transform_4, window_bounds = array<i64: 8, 512>}, {transform_indices = @transform_5, window_bounds = array<i64: 8, 512>}, {transform_indices = @transform_6, window_bounds = array<i64: 8, 3>}, {transform_indices = @transform_7, window_bounds = array<i64: 1, 1>}]} {
    %c0_i32 = arith.constant 0 : i32
    %0 = arith.cmpi eq, %arg0, %c0_i32 : i32
    %c0_i32_0 = arith.constant 0 : i32
    %1 = arith.cmpi eq, %arg1, %c0_i32_0 : i32
    %2 = arith.andi %0, %1 : i1
    %3 = arith.extui %2 : i1 to i32
    %c0_i32_1 = arith.constant 0 : i32
    %4 = arith.cmpi ne, %3, %c0_i32_1 : i32
    scf.if %4 {
      %cst_22 = arith.constant 0.000000e+00 : f32
      %39 = vector.broadcast %cst_22 : f32 to vector<1x512xf32>
      %c0_23 = arith.constant 0 : index
      %c0_24 = arith.constant 0 : index
      %40 = vector.load %arg10[%c0_23, %c0_24] : memref<1x512xf32, #tpu.memory_space<vmem>>, vector<1x512xf32>
      tpu.vector_store %arg10[%c0_23, %c0_24], %39 {strides = array<i32>} : memref<1x512xf32, #tpu.memory_space<vmem>>, vector<1x512xf32>,
    } else {
    }
    %c0 = arith.constant 0 : index
    %c0_2 = arith.constant 0 : index
    %5 = vector.load %arg3[%c0, %c0_2] : memref<8x512xf32, #tpu.memory_space<vmem>>, vector<8x512xf32>
    %c0_3 = arith.constant 0 : index
    %c0_4 = arith.constant 0 : index
    %6 = vector.load %arg2[%c0_3, %c0_4] : memref<8x512xf32, #tpu.memory_space<vmem>>, vector<8x512xf32>
    %7 = arith.subf %5, %6 : vector<8x512xf32>
    %c0_5 = arith.constant 0 : index
    %c0_6 = arith.constant 0 : index
    %8 = vector.load %arg5[%c0_5, %c0_6] : memref<8x512xf32, #tpu.memory_space<vmem>>, vector<8x512xf32>
    %c0_7 = arith.constant 0 : index
    %c0_8 = arith.constant 0 : index
    %9 = vector.load %arg4[%c0_7, %c0_8] : memref<8x512xf32, #tpu.memory_space<vmem>>, vector<8x512xf32>
    %10 = arith.subf %8, %9 : vector<8x512xf32>
    %c0_9 = arith.constant 0 : index
    %c0_10 = arith.constant 0 : index
    %11 = vector.load %arg7[%c0_9, %c0_10] : memref<8x512xf32, #tpu.memory_space<vmem>>, vector<8x512xf32>
    %c0_11 = arith.constant 0 : index
    %c0_12 = arith.constant 0 : index
    %12 = vector.load %arg6[%c0_11, %c0_12] : memref<8x512xf32, #tpu.memory_space<vmem>>, vector<8x512xf32>
    %13 = arith.subf %11, %12 : vector<8x512xf32>
    %c0_13 = arith.constant 0 : index
    %c0_14 = arith.constant 0 : index
    %14 = vector.load %arg8[%c0_13, %c0_14] : memref<8x3xf32, #tpu.memory_space<vmem>>, vector<8x3xf32>
    %15 = vector.extract_strided_slice %14 {offsets = [0, 0], sizes = [8, 1], strides = [1, 1]} : vector<8x3xf32> to vector<8x1xf32>
    %16 = arith.mulf %7, %7 : vector<8x512xf32>
    %17 = vector.broadcast %15 : vector<8x1xf32> to vector<8x512xf32>
    %18 = arith.mulf %17, %16 : vector<8x512xf32>
    %19 = vector.extract_strided_slice %14 {offsets = [0, 1], sizes = [8, 1], strides = [1, 1]} : vector<8x3xf32> to vector<8x1xf32>
    %20 = arith.mulf %10, %10 : vector<8x512xf32>
    %21 = vector.broadcast %19 : vector<8x1xf32> to vector<8x512xf32>
    %22 = arith.mulf %21, %20 : vector<8x512xf32>
    %23 = arith.addf %18, %22 : vector<8x512xf32>
    %24 = vector.extract_strided_slice %14 {offsets = [0, 2], sizes = [8, 1], strides = [1, 1]} : vector<8x3xf32> to vector<8x1xf32>
    %25 = arith.mulf %13, %13 : vector<8x512xf32>
    %26 = vector.broadcast %24 : vector<8x1xf32> to vector<8x512xf32>
    %27 = arith.mulf %26, %25 : vector<8x512xf32>
    %28 = arith.addf %23, %27 : vector<8x512xf32>
    %c0_15 = arith.constant 0 : index
    %c0_16 = arith.constant 0 : index
    %29 = vector.load %arg10[%c0_15, %c0_16] : memref<1x512xf32, #tpu.memory_space<vmem>>, vector<1x512xf32>
    %cst = arith.constant dense<0.000000e+00> : vector<512xf32>
    %30 = vector.multi_reduction <add>, %28, %cst [0] : vector<8x512xf32> to vector<512xf32>
    %31 = vector.shape_cast %30 : vector<512xf32> to vector<1x512xf32>
    %32 = arith.addf %29, %31 : vector<1x512xf32>
    %c0_17 = arith.constant 0 : index
    %c0_18 = arith.constant 0 : index
    %33 = vector.load %arg10[%c0_17, %c0_18] : memref<1x512xf32, #tpu.memory_space<vmem>>, vector<1x512xf32>
    tpu.vector_store %arg10[%c0_17, %c0_18], %32 {strides = array<i32>} : memref<1x512xf32, #tpu.memory_space<vmem>>, vector<1x512xf32>,
    %c0_i32_19 = arith.constant 0 : i32
    %34 = arith.cmpi eq, %arg0, %c0_i32_19 : i32
    %c0_i32_20 = arith.constant 0 : i32
    %35 = arith.cmpi eq, %arg1, %c0_i32_20 : i32
    %36 = arith.andi %34, %35 : i1
    %37 = arith.extui %36 : i1 to i32
    %c0_i32_21 = arith.constant 0 : i32
    %38 = arith.cmpi ne, %37, %c0_i32_21 : i32
    scf.if %38 {
      %c0_22 = arith.constant 0 : index
      %c0_23 = arith.constant 0 : index
      %39 = vector.load %arg10[%c0_22, %c0_23] : memref<1x512xf32, #tpu.memory_space<vmem>>, vector<1x512xf32>
      %40 = vector.shape_cast %39 : vector<1x512xf32> to vector<1x1x512xf32>
      %cst_24 = arith.constant dense<0.000000e+00> : vector<1xf32>
      %41 = vector.multi_reduction <add>, %40, %cst_24 [1, 2] : vector<1x1x512xf32> to vector<1xf32>
      %42 = vector.shape_cast %41 : vector<1xf32> to vector<1x1x1xf32>
      %43 = vector.extract %42[0, 0, 0] : f32 from vector<1x1x1xf32>
      %c0_25 = arith.constant 0 : index
      %c0_26 = arith.constant 0 : index
      %44 = memref.load %arg9[%c0_25, %c0_26] : memref<1x1xf32, #tpu.memory_space<smem>>
      memref.store %43, %arg9[%c0_25, %c0_26] : memref<1x1xf32, #tpu.memory_space<smem>>
    } else {
    }
    return
  }
  func.func @transform_0(%arg0: i32, %arg1: i32) -> (i32, i32) {
    %c0_i32 = arith.constant 0 : i32
    return %arg0, %arg1 : i32, i32
  }
  func.func @transform_1(%arg0: i32, %arg1: i32) -> (i32, i32) {
    %c0_i32 = arith.constant 0 : i32
    return %arg0, %arg1 : i32, i32
  }
  func.func @transform_2(%arg0: i32, %arg1: i32) -> (i32, i32) {
    %c0_i32 = arith.constant 0 : i32
    return %arg0, %arg1 : i32, i32
  }
  func.func @transform_3(%arg0: i32, %arg1: i32) -> (i32, i32) {
    %c0_i32 = arith.constant 0 : i32
    return %arg0, %arg1 : i32, i32
  }
  func.func @transform_4(%arg0: i32, %arg1: i32) -> (i32, i32) {
    %c0_i32 = arith.constant 0 : i32
    return %arg0, %arg1 : i32, i32
  }
  func.func @transform_5(%arg0: i32, %arg1: i32) -> (i32, i32) {
    %c0_i32 = arith.constant 0 : i32
    return %arg0, %arg1 : i32, i32
  }
  func.func @transform_6(%arg0: i32, %arg1: i32) -> (i32, i32) {
    %c0_i32 = arith.constant 0 : i32
    %c0_i32_0 = arith.constant 0 : i32
    return %arg0, %c0_i32 : i32, i32
  }
  func.func @transform_7(%arg0: i32, %arg1: i32) -> (i32, i32) {
    %c0_i32 = arith.constant 0 : i32
    %c0_i32_0 = arith.constant 0 : i32
    %c0_i32_1 = arith.constant 0 : i32
    return %c0_i32, %c0_i32_0 : i32, i32
  }
}

</mosaic_0001>

<llo_original>
// kernel: tpu_custom_call.1
$region0: #{tpu_custom_call.1}
  #allocation0 [shape = 'u32[]', space=smem, size = 0x4, offset = 0x4, fixed_abs, tag = 'smem constant byte address 0x4 - core index']
  #allocation1 [shape = 'u32[144,128]{1,0:T(1,128)}', space=vmem, size = 0x12000, scoped, tag = 'internal scratch']
  #allocation2 [shape = 'f32[1,512]{1,0:T(1,128)}', space=vmem, size = 0x800, scoped, tag = 'scratch operand']
  %s0 = inlined_call_operand.hbm [shape: f32[8,512], index: 0, kind: input, shape index: {}]
  %s1 = inlined_call_operand.hbm [shape: f32[8,512], index: 1, kind: input, shape index: {}]
  %s2 = inlined_call_operand.hbm [shape: f32[8,512], index: 2, kind: input, shape index: {}]
  %s3 = inlined_call_operand.hbm [shape: f32[8,512], index: 3, kind: input, shape index: {}]
  %s4 = inlined_call_operand.hbm [shape: f32[8,512], index: 4, kind: input, shape index: {}]
  %s5 = inlined_call_operand.hbm [shape: f32[8,512], index: 5, kind: input, shape index: {}]
  %s6 = inlined_call_operand.vmem [shape: f32[8,3], index: 6, kind: input, shape index: {}]
  %s7 = inlined_call_operand.hbm [shape: f32[1,1], index: 7, kind: output, shape index: {}]
  %s8 = sld [smem:[#allocation0]]
  $region70: #{tpu_custom_call.1} parent=0
    _
  %s10 = ssub.s32 1, %s8
  %s11 = scalar_select 0, %s10, %s8
  $region1: #{tpu_custom_call.1} parent=0
    #allocation3 [shape = 'u8[16384]{0}', space=vmem, size = 0x4000, scoped, tag = 'input window, operand 0, single buffered']
    #allocation4 [shape = 's32[1]{0}', space=sflag, size = 0x4, scoped, tag = 'scoped memory for tpu_custom_call.1']
    #allocation5 [shape = 's32[1]{0}', space=sflag, size = 0x4, scoped, tag = 'scoped memory for tpu_custom_call.1']
    #allocation6 [shape = 'u8[16384]{0}', space=vmem, size = 0x4000, scoped, tag = 'input window, operand 1, single buffered']
    #allocation7 [shape = 's32[1]{0}', space=sflag, size = 0x4, scoped, tag = 'scoped memory for tpu_custom_call.1']
    #allocation8 [shape = 'u8[16384]{0}', space=vmem, size = 0x4000, scoped, tag = 'input window, operand 2, single buffered']
    #allocation9 [shape = 'u8[16384]{0}', space=vmem, size = 0x4000, scoped, tag = 'input window, operand 3, single buffered']
    #allocation10 [shape = 's32[1]{0}', space=sflag, size = 0x4, scoped, tag = 'scoped memory for tpu_custom_call.1']
    #allocation11 [shape = 'u8[16384]{0}', space=vmem, size = 0x4000, scoped, tag = 'input window, operand 4, single buffered']
    #allocation12 [shape = 'u8[16384]{0}', space=vmem, size = 0x4000, scoped, tag = 'input window, operand 5, single buffered']
    #allocation13 [shape = 's32[1]{0}', space=sflag, size = 0x4, scoped, tag = 'scoped memory for tpu_custom_call.1']
    #allocation14 [shape = 'u8[512]{0}', space=smem, size = 0x200, scoped, tag = 'output window, operand 0, single buffered']
    %12 = vsyncpa [#allocation4], 0
    %13 = vsyncpa [#allocation7], 0
    %14 = vsyncpa [#allocation10], 0
    %15 = vsyncpa [#allocation13], 0
    %16 = vsyncpa [#allocation5], 0
    // Predicated region
    $region2: #{tpu_custom_call.1} parent=1 // pred_check
      _
    $region3: #{tpu_custom_call.1} parent=1 // pred_check_branch
      %18 = sbr.rel (0) target = $region5
    $region4: #{tpu_custom_call.1} parent=1 // pred_region
      %s20 = ssub.s32 512, 512
      %21 = vsyncadd [#allocation4], %s20
      %s23 = sshll.u32 [#allocation3], 4
      %s24 = int_to_ptr.vmem [resolvable:$true] %s23
      %26 = dma.hbm_to_vmem [thread:$0]  %s0, 512, %s24, [#allocation4]
    $region5: #{tpu_custom_call.1} parent=1 // pred_fallthru
      _
    // Predicated region
    $region6: #{tpu_custom_call.1} parent=1 // pred_check
      _
    $region7: #{tpu_custom_call.1} parent=1 // pred_check_branch
      %28 = sbr.rel (0) target = $region9
    $region8: #{tpu_custom_call.1} parent=1 // pred_region
      %s30 = ssub.s32 512, 512
      %31 = vsyncadd [#allocation7], %s30
      %s33 = sshll.u32 [#allocation6], 4
      %s34 = int_to_ptr.vmem [resolvable:$true] %s33
      %36 = dma.hbm_to_vmem [thread:$0]  %s1, 512, %s34, [#allocation7]
    $region9: #{tpu_custom_call.1} parent=1 // pred_fallthru
      _
    // Predicated region
    $region10: #{tpu_custom_call.1} parent=1 // pred_check
      _
    $region11: #{tpu_custom_call.1} parent=1 // pred_check_branch
      %38 = sbr.rel (0) target = $region13
    $region12: #{tpu_custom_call.1} parent=1 // pred_region
      %s40 = ssub.s32 512, 512
      %41 = vsyncadd [#allocation7], %s40
      %s43 = sshll.u32 [#allocation8], 4
      %s44 = int_to_ptr.vmem [resolvable:$true] %s43
      %46 = dma.hbm_to_vmem [thread:$0]  %s2, 512, %s44, [#allocation7]
    $region13: #{tpu_custom_call.1} parent=1 // pred_fallthru
      _
    // Predicated region
    $region14: #{tpu_custom_call.1} parent=1 // pred_check
      _
    $region15: #{tpu_custom_call.1} parent=1 // pred_check_branch
      %48 = sbr.rel (0) target = $region17
    $region16: #{tpu_custom_call.1} parent=1 // pred_region
      %s50 = ssub.s32 512, 512
      %51 = vsyncadd [#allocation10], %s50
      %s53 = sshll.u32 [#allocation9], 4
      %s54 = int_to_ptr.vmem [resolvable:$true] %s53
      %56 = dma.hbm_to_vmem [thread:$0]  %s3, 512, %s54, [#allocation10]
    $region17: #{tpu_custom_call.1} parent=1 // pred_fallthru
      _
    // Predicated region
    $region18: #{tpu_custom_call.1} parent=1 // pred_check
      _
    $region19: #{tpu_custom_call.1} parent=1 // pred_check_branch
      %58 = sbr.rel (0) target = $region21
    $region20: #{tpu_custom_call.1} parent=1 // pred_region
      %s60 = ssub.s32 512, 512
      %61 = vsyncadd [#allocation10], %s60
      %s63 = sshll.u32 [#allocation11], 4
      %s64 = int_to_ptr.vmem [resolvable:$true] %s63
      %66 = dma.hbm_to_vmem [thread:$0]  %s4, 512, %s64, [#allocation10]
    $region21: #{tpu_custom_call.1} parent=1 // pred_fallthru
      _
    // Predicated region
    $region22: #{tpu_custom_call.1} parent=1 // pred_check
      _
    $region23: #{tpu_custom_call.1} parent=1 // pred_check_branch
      %68 = sbr.rel (0) target = $region25
    $region24: #{tpu_custom_call.1} parent=1 // pred_region
      %s70 = ssub.s32 512, 512
      %71 = vsyncadd [#allocation13], %s70
      %s73 = sshll.u32 [#allocation12], 4
      %s74 = int_to_ptr.vmem [resolvable:$true] %s73
      %76 = dma.hbm_to_vmem [thread:$0]  %s5, 512, %s74, [#allocation13]
    $region25: #{tpu_custom_call.1} parent=1 // pred_fallthru
      _
    // Predicated region
    $region26: #{tpu_custom_call.1} parent=1 // pred_check
      _
    $region27: #{tpu_custom_call.1} parent=1 // pred_check_branch
      %78 = sbr.rel (0) target = $region29
    $region28: #{tpu_custom_call.1} parent=1 // pred_region
      _
    $region29: #{tpu_custom_call.1} parent=1 // pred_fallthru
      _
    // Predicated region
    $region30: #{tpu_custom_call.1} parent=1 // pred_check
      _
    $region31: #{tpu_custom_call.1} parent=1 // pred_check_branch
      %80 = sbr.rel (0) target = $region33
    $region32: #{tpu_custom_call.1} parent=1 // pred_region
      %81 = dma.done [#allocation4], 512
    $region33: #{tpu_custom_call.1} parent=1 // pred_fallthru
      _
    // Predicated region
    $region34: #{tpu_custom_call.1} parent=1 // pred_check
      _
    $region35: #{tpu_custom_call.1} parent=1 // pred_check_branch
      %83 = sbr.rel (0) target = $region37
    $region36: #{tpu_custom_call.1} parent=1 // pred_region
      %84 = dma.done [#allocation7], 512
    $region37: #{tpu_custom_call.1} parent=1 // pred_fallthru
      _
    // Predicated region
    $region38: #{tpu_custom_call.1} parent=1 // pred_check
      _
    $region39: #{tpu_custom_call.1} parent=1 // pred_check_branch
      %86 = sbr.rel (0) target = $region41
    $region40: #{tpu_custom_call.1} parent=1 // pred_region
      %87 = dma.done [#allocation7], 512
    $region41: #{tpu_custom_call.1} parent=1 // pred_fallthru
      _
    // Predicated region
    $region42: #{tpu_custom_call.1} parent=1 // pred_check
      _
    $region43: #{tpu_custom_call.1} parent=1 // pred_check_branch
      %89 = sbr.rel (0) target = $region45
    $region44: #{tpu_custom_call.1} parent=1 // pred_region
      %90 = dma.done [#allocation10], 512
    $region45: #{tpu_custom_call.1} parent=1 // pred_fallthru
      _
    // Predicated region
    $region46: #{tpu_custom_call.1} parent=1 // pred_check
      _
    $region47: #{tpu_custom_call.1} parent=1 // pred_check_branch
      %92 = sbr.rel (0) target = $region49
    $region48: #{tpu_custom_call.1} parent=1 // pred_region
      %93 = dma.done [#allocation10], 512
    $region49: #{tpu_custom_call.1} parent=1 // pred_fallthru
      _
    // Predicated region
    $region50: #{tpu_custom_call.1} parent=1 // pred_check
      _
    $region51: #{tpu_custom_call.1} parent=1 // pred_check_branch
      %95 = sbr.rel (0) target = $region53
    $region52: #{tpu_custom_call.1} parent=1 // pred_region
      %96 = dma.done [#allocation13], 512
    $region53: #{tpu_custom_call.1} parent=1 // pred_fallthru
      _
    %p97 = scmp.eq.s32.totalorder 0, 0
    %p98 = scmp.eq.s32.totalorder 0, 0
    %p99 = pnand %p97, %p98
    %p100 = pneg %p99
    // Predicated region
    $region54: #{tpu_custom_call.1} parent=1 // pred_check
      _
    $region55: #{tpu_custom_call.1} parent=1 // pred_check_branch
      %102 = sbr.rel (%p99) target = $region57
    $region56: #{tpu_custom_call.1} parent=1 // pred_region
      %v103 = vlaneseq
      %vm104 = vcmp.ge.s32.totalorder %v103, 0
      %vm105 = vcmp.lt.s32.totalorder %v103, 512
      %vm106 = vmand %vm104, %vm105
      %107 = vst.msk [vmem:[#allocation2] sm:$0xf] %vm106, 0.0
    $region57: #{tpu_custom_call.1} parent=1 // pred_fallthru
      _
    %v108 = vld [vmem:[#allocation6] sm:$0xff]
    %v109 = vld [vmem:[#allocation6 + $0x8] sm:$0xff]
    %v110 = vld [vmem:[#allocation6 + $0x10] sm:$0xff]
    %v111 = vld [vmem:[#allocation6 + $0x18] sm:$0xff]
    %v112 = vld [vmem:[#allocation3] sm:$0xff]
    %v113 = vld [vmem:[#allocation3 + $0x8] sm:$0xff]
    %v114 = vld [vmem:[#allocation3 + $0x10] sm:$0xff]
    %v115 = vld [vmem:[#allocation3 + $0x18] sm:$0xff]
    %v116 = vsub.f32 %v108, %v112
    %v117 = vsub.f32 %v109, %v113
    %v118 = vsub.f32 %v110, %v114
    %v119 = vsub.f32 %v111, %v115
    %v120 = vld [vmem:[#allocation9] sm:$0xff]
    %v121 = vld [vmem:[#allocation9 + $0x8] sm:$0xff]
    %v122 = vld [vmem:[#allocation9 + $0x10] sm:$0xff]
    %v123 = vld [vmem:[#allocation9 + $0x18] sm:$0xff]
    %v124 = vld [vmem:[#allocation8] sm:$0xff]
    %v125 = vld [vmem:[#allocation8 + $0x8] sm:$0xff]
    %v126 = vld [vmem:[#allocation8 + $0x10] sm:$0xff]
    %v127 = vld [vmem:[#allocation8 + $0x18] sm:$0xff]
    %v128 = vsub.f32 %v120, %v124
    %v129 = vsub.f32 %v121, %v125
    %v130 = vsub.f32 %v122, %v126
    %v131 = vsub.f32 %v123, %v127
    %v132 = vld [vmem:[#allocation12] sm:$0xff]
    %v133 = vld [vmem:[#allocation12 + $0x8] sm:$0xff]
    %v134 = vld [vmem:[#allocation12 + $0x10] sm:$0xff]
    %v135 = vld [vmem:[#allocation12 + $0x18] sm:$0xff]
    %v136 = vld [vmem:[#allocation11] sm:$0xff]
    %v137 = vld [vmem:[#allocation11 + $0x8] sm:$0xff]
    %v138 = vld [vmem:[#allocation11 + $0x10] sm:$0xff]
    %v139 = vld [vmem:[#allocation11 + $0x18] sm:$0xff]
    %v140 = vsub.f32 %v132, %v136
    %v141 = vsub.f32 %v133, %v137
    %v142 = vsub.f32 %v134, %v138
    %v143 = vsub.f32 %v135, %v139
    %v144 = vld [vmem:[%s6] sm:$0xff]
    %v145 = vmul.f32 %v116, %v116
    %v146 = vmul.f32 %v117, %v117
    %v147 = vmul.f32 %v118, %v118
    %v148 = vmul.f32 %v119, %v119
    %150 = vset.pattern.permute.xlu0 0
    %151 = vperm.xlu0 %150, %v144
    %v152 = vpop.permute.xlu0 %151
    %v154 = vmul.f32 %v152, %v145
    %v155 = vmul.f32 %v152, %v146
    %v156 = vmul.f32 %v152, %v147
    %v157 = vmul.f32 %v152, %v148
    %v158 = vmul.f32 %v128, %v128
    %v159 = vmul.f32 %v129, %v129
    %v160 = vmul.f32 %v130, %v130
    %v161 = vmul.f32 %v131, %v131
    %162 = vset.pattern.permute.xlu0 1
    %163 = vperm.xlu0 %162, %v144
    %v164 = vpop.permute.xlu0 %163
    %v166 = vmul.f32 %v164, %v158
    %v167 = vmul.f32 %v164, %v159
    %v168 = vmul.f32 %v164, %v160
    %v169 = vmul.f32 %v164, %v161
    %v170 = vadd.f32 %v154, %v166
    %v171 = vadd.f32 %v155, %v167
    %v172 = vadd.f32 %v156, %v168
    %v173 = vadd.f32 %v157, %v169
    %v174 = vmul.f32 %v140, %v140
    %v175 = vmul.f32 %v141, %v141
    %v176 = vmul.f32 %v142, %v142
    %v177 = vmul.f32 %v143, %v143
    %178 = vset.pattern.permute.xlu0 2
    %179 = vperm.xlu0 %178, %v144
    %v180 = vpop.permute.xlu0 %179
    %v182 = vmul.f32 %v180, %v174
    %v183 = vmul.f32 %v180, %v175
    %v184 = vmul.f32 %v180, %v176
    %v185 = vmul.f32 %v180, %v177
    %v186 = vadd.f32 %v170, %v182
    %v187 = vadd.f32 %v171, %v183
    %v188 = vadd.f32 %v172, %v184
    %v189 = vadd.f32 %v173, %v185
    %v190 = vld [vmem:[#allocation2] sm:$0xf]
    %v191 = vrot.slane %v186, 4
    %v192 = vadd.f32 %v186, %v191
    %v193 = vrot.slane %v192, 2
    %v194 = vadd.f32 %v192, %v193
    %v195 = vrot.slane %v194, 1
    %v196 = vadd.f32 %v194, %v195
    %v197 = vrot.slane %v187, 4
    %v198 = vadd.f32 %v187, %v197
    %v199 = vrot.slane %v198, 2
    %v200 = vadd.f32 %v198, %v199
    %v201 = vrot.slane %v200, 1
    %v202 = vadd.f32 %v200, %v201
    %v203 = vrot.slane %v188, 4
    %v204 = vadd.f32 %v188, %v203
    %v205 = vrot.slane %v204, 2
    %v206 = vadd.f32 %v204, %v205
    %v207 = vrot.slane %v206, 1
    %v208 = vadd.f32 %v206, %v207
    %v209 = vrot.slane %v189, 4
    %v210 = vadd.f32 %v189, %v209
    %v211 = vrot.slane %v210, 2
    %v212 = vadd.f32 %v210, %v211
    %v213 = vrot.slane %v212, 1
    %v214 = vadd.f32 %v212, %v213
    %v219 = vcombine.low %v196, %v202
    %v220 = vcombine.low %v208, %v214
    %v222 = vunpack.c.l.s4 1966171168
    %v223 = vunpack.c.0.s8 %v222
    %v224 = vlaneseq
    %v225 = vshrl.u32 %v224, 7
    %v226 = vsub.s32 %v223, %v225
    %v227 = vrot.slane %v219, %v226
    %v229 = vunpack.c.l.s4 1966171168
    %v230 = vunpack.c.0.s8 %v229
    %v231 = vlaneseq
    %v232 = vshrl.u32 %v231, 7
    %v233 = vsub.s32 %v230, %v232
    %v234 = vrot.slane %v220, %v233
    %v235 = vcombine.low %v227, %v234
    %v237 = vunpack.c.l.s4 1966171168
    %v238 = vunpack.c.0.s8 %v237
    %v239 = vlaneseq
    %v240 = vshrl.u32 %v239, 7
    %v241 = vsub.s32 %v238, %v240
    %v242 = vrot.slane %v235, %v241
    %v244 = vadd.f32 %v190, %v242
    %v245 = vlaneseq
    %vm246 = vcmp.ge.s32.totalorder %v245, 0
    %vm247 = vcmp.lt.s32.totalorder %v245, 512
    %vm248 = vmand %vm246, %vm247
    %249 = vst.msk [vmem:[#allocation2] sm:$0xf] %vm248, %v244
    // Predicated region
    $region58: #{tpu_custom_call.1} parent=1 // pred_check
      _
    $region59: #{tpu_custom_call.1} parent=1 // pred_check_branch
      %251 = sbr.rel (%p99) target = $region61
    $region60: #{tpu_custom_call.1} parent=1 // pred_region
      %v252 = vld [vmem:[#allocation2] sm:$0xf]
      %v254 = vlaneseq
      %v255 = vshrl.u32 %v254, 7
      %v256 = vsub.s32 0, %v255
      %v257 = vrot.slane %v252, %v256
      %v258 = vlaneseq
      %v259 = vshrl.u32 %v258, 7
      %v260 = vsub.s32 1, %v259
      %v261 = vrot.slane %v252, %v260
      %v262 = vlaneseq
      %v263 = vshrl.u32 %v262, 7
      %v264 = vsub.s32 2, %v263
      %v265 = vrot.slane %v252, %v264
      %v266 = vlaneseq
      %v267 = vshrl.u32 %v266, 7
      %v268 = vsub.s32 3, %v267
      %v269 = vrot.slane %v252, %v268
      %vm274 = vcmask 1040384
      %v275 = vsel %vm274, %v257, 0.0
      %v276 = vsel %vm274, %v261, 0.0
      %v277 = vadd.f32 %v275, %v276
      %v278 = vsel %vm274, %v265, 0.0
      %v279 = vadd.f32 %v277, %v278
      %v280 = vsel %vm274, %v269, 0.0
      %v281 = vadd.f32 %v279, %v280
      %282 = vadd.xlane.f32.xlu0 %v281
      %v283 = vpop.xlane.xlu0 %282
      %v284 = vrot.slane %v283, 4
      %v285 = vadd.f32 %v283, %v284
      %v286 = vrot.slane %v285, 2
      %v287 = vadd.f32 %v285, %v286
      %v288 = vrot.slane %v287, 1
      %v289 = vadd.f32 %v287, %v288
      %s290 = vtos %v289
      %s291 = scalar_lea.smem [#allocation14], 0
      %292 = sst [smem:[%s291]] %s290
    $region61: #{tpu_custom_call.1} parent=1 // pred_fallthru
      _
    // Predicated region
    $region62: #{tpu_custom_call.1} parent=1 // pred_check
      _
    $region63: #{tpu_custom_call.1} parent=1 // pred_check_branch
      %294 = sbr.rel (0) target = $region65
    $region64: #{tpu_custom_call.1} parent=1 // pred_region
      %s296 = ssub.s32 16, 16
      %297 = vsyncadd [#allocation5], %s296
      %300 = dma.smem_to_hbm [#allocation14], 16, %s7, [#allocation5]
    $region65: #{tpu_custom_call.1} parent=1 // pred_fallthru
      _
    // Predicated region
    $region66: #{tpu_custom_call.1} parent=1 // pred_check
      _
    $region67: #{tpu_custom_call.1} parent=1 // pred_check_branch
      %302 = sbr.rel (0) target = $region69
    $region68: #{tpu_custom_call.1} parent=1 // pred_region
      %303 = dma.done [#allocation5], 16
    $region69: #{tpu_custom_call.1} parent=1 // pred_fallthru
      _
    %304 = sfence
    %305 = vsyncpa [#allocation4], 1
    %306 = vsyncpa [#allocation7], 1
    %307 = vsyncpa [#allocation10], 1
    %308 = vsyncpa [#allocation13], 1
    %309 = vsyncpa [#allocation5], 1

</llo_original>
